<compile_context>
chip_gen: v6e
topology: v6e:2x2x1
jax: 0.10.0
libtpu: 0.0.40
codegen_flags: <defaults>
</compile_context>

<pallas_src>
import jax
import jax.numpy as jnp
from jax.experimental import pallas as pl
from jax.experimental.pallas import tpu as pltpu


def _round_up(x, m):
    return (x + m - 1) // m * m


def _divisors(n):
    ds = set()
    d = 1
    while d * d <= n:
        if n % d == 0:
            ds.add(d)
            ds.add(n // d)
        d += 1
    return sorted(ds)


def _vmem_capacity_bytes():
    # Generation-aware budgeting; conservative (v7x-sized) fallback if the query
    # is unavailable so we never over-commit VMEM.
    try:
        return int(pltpu.get_tpu_info().vmem_capacity_bytes)
    except Exception:
        return 64 * 1024 * 1024


def _merge_matmul_kernel(x_ref, w_ref, b_ref, o_ref):
    # x_ref: (tm, Kp) patch rows; w_ref: (Kp, tn); b_ref: (1, tn) f32; o_ref: (tm, tn).
    acc = jnp.dot(x_ref[...], w_ref[...], preferred_element_type=jnp.float32)
    o_ref[...] = (acc + b_ref[...]).astype(o_ref.dtype)


def patch_merging(x, weight, bias, *, block_m=None, out_layout="NCHW",
                  compute_dtype="auto"):
    """2x2 stride-2 conv (SWIN PatchMerging).

    x: [N, C, H, W] (NCHW, like the PyTorch module).
    weight: [out_dim, C, 2, 2]. bias: [out_dim].
    Returns NCHW [N, out_dim, H//2, W//2] (or NHWC if out_layout == "NHWC").
    compute_dtype: "auto" (bf16 for f32 inputs; f32 accumulation), a dtype, or None
                   (keep the input dtype).
    """
    N, C, H, W = x.shape
    O = weight.shape[0]
    Ho, Wo = H // 2, W // 2
    if H != 2 * Ho or W != 2 * Wo:            # conv with stride 2 drops ragged edges
        x = x[:, :, : 2 * Ho, : 2 * Wo]

    out_dtype = x.dtype
    if isinstance(compute_dtype, str) and compute_dtype == "auto":
        cdt = jnp.bfloat16 if jnp.dtype(x.dtype) == jnp.float32 else jnp.dtype(x.dtype)
    elif compute_dtype is None:
        cdt = jnp.dtype(x.dtype)
    else:
        cdt = jnp.dtype(compute_dtype)

    # --- space-to-depth (one fused XLA relayout) + conv-weight flatten ------------
    # Feature order (c, kh, kw) matches weight.reshape(O, C*4).
    patches = (
        x.reshape(N, C, Ho, 2, Wo, 2)
        .transpose(0, 2, 4, 1, 3, 5)          # [N, Ho, Wo, C, 2, 2]
        .reshape(N * Ho * Wo, C * 4)
        .astype(cdt)
    )
    w2 = weight.reshape(O, C * 4).T.astype(cdt)   # (K, O)
    b2 = bias.astype(jnp.float32)

    M, K = N * Ho * Wo, C * 4
    Kp = _round_up(K, 128)                    # lane-dense contraction dim
    Op = _round_up(O, 128)                    # lane-dense output stores
    Mp = _round_up(M, 128)                    # small row pad only (tm picked from divisors)

    if Kp != K or Mp != M:
        patches = jnp.pad(patches, ((0, Mp - M), (0, Kp - K)))
    if Kp != K:
        w2 = jnp.pad(w2, ((0, Kp - K), (0, 0)))
    if Op != O:
        w2 = jnp.pad(w2, ((0, 0), (0, Op - O)))
        b2 = jnp.pad(b2, (0, Op - O))
    b2 = b2.reshape(1, Op)

    in_isz = jnp.dtype(cdt).itemsize
    out_isz = jnp.dtype(out_dtype).itemsize

    # --- generation-aware VMEM budgets ---------------------------------------------
    cap = _vmem_capacity_bytes()
    if cap <= 80 * 1024 * 1024:               # v7x-class: 64 MiB per TensorCore
        resident_w_bytes = 12 * 1024 * 1024
        shrink_budget = 30 * 1024 * 1024
        vmem_cap = 40 * 1024 * 1024
        default_bm = 512
    else:                                     # v5e / v6e: 128 MiB VMEM
        resident_w_bytes = 24 * 1024 * 1024
        shrink_budget = 60 * 1024 * 1024
        vmem_cap = 96 * 1024 * 1024
        default_bm = 1024
    bm = max(128, int(block_m)) if block_m is not None else default_bm

    def _vmem_est(tm_, tn_):
        # Patches and output double-buffered; weight counted double too so the
        # estimate stays valid even if single-buffering (Buffered(1)) is unavailable.
        return (2 * tm_ * Kp * in_isz + 2 * Kp * tn_ * in_isz
                + 2 * tm_ * tn_ * out_isz + 2 * tn_ * 4)

    # --- tile selection --------------------------------------------------------------
    # tm is always a 128-multiple divisor of Mp, so blocks divide exactly and no large
    # pad of the patches array is ever needed.
    cands = [128 * d for d in _divisors(Mp // 128)]     # ascending

    def _pick_tm(tn_):
        tm_ = max(c for c in cands if c <= bm)
        while _vmem_est(tm_, tn_) > shrink_budget and tm_ > cands[0]:
            tm_ = max(c for c in cands if c < tm_)
        return tm_

    # Keep the whole (Kp, Op) weight resident when it comfortably fits (avoids
    # re-reading the patches stream once per out_dim tile); otherwise tile out_dim,
    # preferring tn in {512, 256} so the 256-wide v6e/v7x MXU stays fed.
    if Kp * Op * in_isz <= resident_w_bytes:
        tn = Op
    else:
        tn = 512 if Op % 512 == 0 else (256 if Op % 256 == 0 else 128)
    tm = _pick_tm(tn)
    if _vmem_est(tm, tn) > shrink_budget and tn == Op and Op > 128:
        tn = 512 if Op % 512 == 0 else (256 if Op % 256 == 0 else 128)
        tm = _pick_tm(tn)

    # v7x has 2 TensorCores: make sure at least one parallel grid axis has >= 2 tiles.
    if Op // tn == 1 and Mp // tm < 2:
        smaller = [c for c in cands if c < tm]
        if smaller:
            tm = max(smaller)

    # n (out_dim tiles) is the OUTER grid axis, m the inner/fastest one: the weight
    # and bias block indices are constant across the whole inner m sweep, so they are
    # fetched once per n tile and stay resident in VMEM.
    grid = (Op // tn, Mp // tm)

    cost = pl.CostEstimate(
        flops=int(2 * Mp * Kp * Op),
        transcendentals=0,
        bytes_accessed=int((Op // tn) * Mp * Kp * in_isz   # patches re-read per n tile
                           + Kp * Op * in_isz              # weight (read once total)
                           + Mp * Op * out_isz),           # output, in out_dtype
    )

    vmem_limit = int(min(max(2 * _vmem_est(tm, tn), 32 * 1024 * 1024), vmem_cap))

    def _call(single_buffer_weights):
        pm = {"pipeline_mode": pl.Buffered(1)} if single_buffer_weights else {}
        return pl.pallas_call(
            _merge_matmul_kernel,
            out_shape=jax.ShapeDtypeStruct((Mp, Op), out_dtype),
            grid_spec=pltpu.PrefetchScalarGridSpec(
                num_scalar_prefetch=0,
                grid=grid,
                in_specs=[
                    pl.BlockSpec((tm, Kp), lambda j, i: (i, 0)),        # patches (streamed)
                    pl.BlockSpec((Kp, tn), lambda j, i: (0, j), **pm),  # weight (resident per j)
                    pl.BlockSpec((1, tn), lambda j, i: (0, j), **pm),   # bias   (resident per j)
                ],
                out_specs=pl.BlockSpec((tm, tn), lambda j, i: (i, j)),
            ),
            compiler_params=pltpu.CompilerParams(
                dimension_semantics=("parallel", "parallel"),
                vmem_limit_bytes=vmem_limit,
            ),
            cost_estimate=cost,
        )(patches, w2, b2)

    try:
        out = _call(True)
    except Exception:
        # Older JAX builds may not accept pipeline_mode=Buffered(1); semantics are
        # identical either way, only the weight double-buffer VMEM differs.
        out = _call(False)

    out = out[:M, :O]                          # drop row / lane padding
    y = out.reshape(N, Ho, Wo, O)
    if out_layout == "NHWC":
        return y                               # no extra HBM pass for NHWC consumers
    return y.transpose(0, 3, 1, 2)             # NCHW to match the PyTorch module


if __name__ == "__main__":
    key = jax.random.PRNGKey(0)
    kx, kw, kb = jax.random.split(key, 3)

    # Small shapes consistent with the module: input_dim=4, output_dim=8.
    N, C, H, W = 2, 4, 16, 16
    out_dim = 8

    x = jax.random.normal(kx, (N, C, H, W), dtype=jnp.float32)
    fan_in = C * 2 * 2
    weight = jax.random.normal(kw, (out_dim, C, 2, 2), dtype=jnp.float32) / jnp.sqrt(fan_in)
    bias = jax.random.normal(kb, (out_dim,), dtype=jnp.float32) * 0.1

    # Pure-JAX reference (strided conv, highest precision) for sanity checks.
    y_ref = jax.lax.conv_general_dilated(
        x, weight, window_strides=(2, 2), padding="VALID",
        dimension_numbers=("NCHW", "OIHW", "NCHW"),
        precision=jax.lax.Precision.HIGHEST,
    ) + bias.reshape(1, out_dim, 1, 1)

    # f32-compute path (tolerance covers possible multi-pass MXU f32 matmul modes).
    y32 = jax.block_until_ready(patch_merging(x, weight, bias, compute_dtype=jnp.float32))
    assert y32.shape == (N, out_dim, H // 2, W // 2), y32.shape
    assert jnp.allclose(y32, y_ref, atol=1e-2, rtol=1e-2), "f32 mismatch vs conv reference"

    # Default path: bf16 compute, f32 accumulation (documented numerics change).
    y = jax.block_until_ready(patch_merging(x, weight, bias))
    assert y.shape == (N, out_dim, H // 2, W // 2), y.shape
    assert y.dtype == x.dtype, y.dtype
    assert jnp.allclose(y, y_ref, atol=5e-2, rtol=5e-2), "bf16 mismatch vs conv reference"

    print("KERNEL_OK")
</pallas_src>

<mosaic_0001>
module attributes {stable_mosaic.version = 11 : i64} {
  func.func @_merge_matmul_kernel(%arg0: i32, %arg1: i32, %arg2: memref<128x128xf32, #tpu.memory_space<vmem>>, %arg3: memref<128x128xf32, #tpu.memory_space<vmem>>, %arg4: memref<1x128xf32, #tpu.memory_space<vmem>>, %arg5: memref<128x128xf32, #tpu.memory_space<vmem>>) attributes {dimension_semantics = [#tpu.dimension_semantics<parallel>, #tpu.dimension_semantics<parallel>], iteration_bounds = array<i64: 1, 1>, scalar_prefetch = 0 : i64, scratch_operands = 0 : i64, tpu.core_type = #tpu.core_type<tc>, window_params = [{transform_indices = @transform_0, window_bounds = array<i64: 128, 128>}, {pipeline_mode = #tpu.pipeline_mode<synchronous>, transform_indices = @transform_1, window_bounds = array<i64: 128, 128>}, {pipeline_mode = #tpu.pipeline_mode<synchronous>, transform_indices = @transform_2, window_bounds = array<i64: 1, 128>}, {transform_indices = @transform_3, window_bounds = array<i64: 128, 128>}]} {
    %c0 = arith.constant 0 : index
    %c0_0 = arith.constant 0 : index
    %0 = vector.load %arg2[%c0, %c0_0] : memref<128x128xf32, #tpu.memory_space<vmem>>, vector<128x128xf32>
    %c0_1 = arith.constant 0 : index
    %c0_2 = arith.constant 0 : index
    %1 = vector.load %arg3[%c0_1, %c0_2] : memref<128x128xf32, #tpu.memory_space<vmem>>, vector<128x128xf32>
    %cst = arith.constant dense<0.000000e+00> : vector<128x128xf32>
    %2 = tpu.matmul %0, %1, %cst {dimension_numbers = #tpu.dot_dimension_numbers<[1], [0], [0], [1], [0, 0, 1, 1], [], []>} : vector<128x128xf32>, vector<128x128xf32>, vector<128x128xf32> -> vector<128x128xf32>
    %c0_3 = arith.constant 0 : index
    %c0_4 = arith.constant 0 : index
    %3 = vector.load %arg4[%c0_3, %c0_4] : memref<1x128xf32, #tpu.memory_space<vmem>>, vector<1x128xf32>
    %4 = vector.broadcast %3 : vector<1x128xf32> to vector<128x128xf32>
    %5 = arith.addf %2, %4 : vector<128x128xf32>
    %c0_5 = arith.constant 0 : index
    %c0_6 = arith.constant 0 : index
    %6 = vector.load %arg5[%c0_5, %c0_6] : memref<128x128xf32, #tpu.memory_space<vmem>>, vector<128x128xf32>
    tpu.vector_store %arg5[%c0_5, %c0_6], %5 {strides = array<i32>} : memref<128x128xf32, #tpu.memory_space<vmem>>, vector<128x128xf32>,
    return
  }
  func.func @transform_0(%arg0: i32, %arg1: i32) -> (i32, i32) {
    %c0_i32 = arith.constant 0 : i32
    %c0_i32_0 = arith.constant 0 : i32
    return %arg1, %c0_i32 : i32, i32
  }
  func.func @transform_1(%arg0: i32, %arg1: i32) -> (i32, i32) {
    %c0_i32 = arith.constant 0 : i32
    %c0_i32_0 = arith.constant 0 : i32
    return %c0_i32, %arg0 : i32, i32
  }
  func.func @transform_2(%arg0: i32, %arg1: i32) -> (i32, i32) {
    %c0_i32 = arith.constant 0 : i32
    %c0_i32_0 = arith.constant 0 : i32
    return %c0_i32, %arg0 : i32, i32
  }
  func.func @transform_3(%arg0: i32, %arg1: i32) -> (i32, i32) {
    %c0_i32 = arith.constant 0 : i32
    return %arg1, %arg0 : i32, i32
  }
}

module attributes {stable_mosaic.version = 11 : i64} {
  func.func @_merge_matmul_kernel(%arg0: i32, %arg1: i32, %arg2: memref<128x128xf32, #tpu.memory_space<vmem>>, %arg3: memref<128x128xf32, #tpu.memory_space<vmem>>, %arg4: memref<1x128xf32, #tpu.memory_space<vmem>>, %arg5: memref<128x128xf32, #tpu.memory_space<vmem>>) attributes {dimension_semantics = [#tpu.dimension_semantics<parallel>, #tpu.dimension_semantics<parallel>], iteration_bounds = array<i64: 1, 1>, scalar_prefetch = 0 : i64, scratch_operands = 0 : i64, tpu.core_type = #tpu.core_type<tc>, window_params = [{transform_indices = @transform_0, window_bounds = array<i64: 128, 128>}, {transform_indices = @transform_1, window_bounds = array<i64: 128, 128>}, {transform_indices = @transform_2, window_bounds = array<i64: 1, 128>}, {transform_indices = @transform_3, window_bounds = array<i64: 128, 128>}]} {
    %c0 = arith.constant 0 : index
    %c0_0 = arith.constant 0 : index
    %0 = vector.load %arg2[%c0, %c0_0] : memref<128x128xf32, #tpu.memory_space<vmem>>, vector<128x128xf32>
    %c0_1 = arith.constant 0 : index
    %c0_2 = arith.constant 0 : index
    %1 = vector.load %arg3[%c0_1, %c0_2] : memref<128x128xf32, #tpu.memory_space<vmem>>, vector<128x128xf32>
    %cst = arith.constant dense<0.000000e+00> : vector<128x128xf32>
    %2 = tpu.matmul %0, %1, %cst {dimension_numbers = #tpu.dot_dimension_numbers<[1], [0], [0], [1], [0, 0, 1, 1], [], []>} : vector<128x128xf32>, vector<128x128xf32>, vector<128x128xf32> -> vector<128x128xf32>
    %c0_3 = arith.constant 0 : index
    %c0_4 = arith.constant 0 : index
    %3 = vector.load %arg4[%c0_3, %c0_4] : memref<1x128xf32, #tpu.memory_space<vmem>>, vector<1x128xf32>
    %4 = vector.broadcast %3 : vector<1x128xf32> to vector<128x128xf32>
    %5 = arith.addf %2, %4 : vector<128x128xf32>
    %c0_5 = arith.constant 0 : index
    %c0_6 = arith.constant 0 : index
    %6 = vector.load %arg5[%c0_5, %c0_6] : memref<128x128xf32, #tpu.memory_space<vmem>>, vector<128x128xf32>
    tpu.vector_store %arg5[%c0_5, %c0_6], %5 {strides = array<i32>} : memref<128x128xf32, #tpu.memory_space<vmem>>, vector<128x128xf32>,
    return
  }
  func.func @transform_0(%arg0: i32, %arg1: i32) -> (i32, i32) {
    %c0_i32 = arith.constant 0 : i32
    %c0_i32_0 = arith.constant 0 : i32
    return %arg1, %c0_i32 : i32, i32
  }
  func.func @transform_1(%arg0: i32, %arg1: i32) -> (i32, i32) {
    %c0_i32 = arith.constant 0 : i32
    %c0_i32_0 = arith.constant 0 : i32
    return %c0_i32, %arg0 : i32, i32
  }
  func.func @transform_2(%arg0: i32, %arg1: i32) -> (i32, i32) {
    %c0_i32 = arith.constant 0 : i32
    %c0_i32_0 = arith.constant 0 : i32
    return %c0_i32, %arg0 : i32, i32
  }
  func.func @transform_3(%arg0: i32, %arg1: i32) -> (i32, i32) {
    %c0_i32 = arith.constant 0 : i32
    return %arg1, %arg0 : i32, i32
  }
}

</mosaic_0001>

<llo_original>
// kernel: tpu_custom_call.1
$region0: #{tpu_custom_call.1}
  #allocation0 [shape = 'u32[]', space=smem, size = 0x4, offset = 0x4, fixed_abs, tag = 'smem constant byte address 0x4 - core index']
  #allocation1 [shape = 'u32[144,128]{1,0:T(1,128)}', space=vmem, size = 0x12000, scoped, tag = 'internal scratch']
  %s0 = inlined_call_operand.hbm [shape: f32[128,128], index: 0, kind: input, shape index: {}]
  %s1 = inlined_call_operand.hbm [shape: f32[128,128], index: 1, kind: input, shape index: {}]
  %s2 = inlined_call_operand.vmem [shape: f32[1,128], index: 2, kind: input, shape index: {}]
  %s3 = inlined_call_operand.hbm [shape: f32[128,128], index: 3, kind: output, shape index: {}]
  %s4 = sld [smem:[#allocation0]]
  $region30: #{tpu_custom_call.1} parent=0
    _
  %s6 = ssub.s32 1, %s4
  %s7 = scalar_select 0, %s6, %s4
  $region1: #{tpu_custom_call.1} parent=0
    #allocation2 [shape = 'u8[65536]{0}', space=vmem, size = 0x10000, scoped, tag = 'input window, operand 0, single buffered']
    #allocation3 [shape = 's32[1]{0}', space=sflag, size = 0x4, scoped, tag = 'scoped memory for tpu_custom_call.1']
    #allocation4 [shape = 's32[1]{0}', space=sflag, size = 0x4, scoped, tag = 'scoped memory for tpu_custom_call.1']
    #allocation5 [shape = 'u8[65536]{0}', space=vmem, size = 0x10000, scoped, tag = 'input window, operand 1, single buffered']
    #allocation6 [shape = 's32[1]{0}', space=sflag, size = 0x4, scoped, tag = 'scoped memory for tpu_custom_call.1']
    #allocation7 [shape = 'u8[65536]{0}', space=vmem, size = 0x10000, scoped, tag = 'output window, operand 0, single buffered']
    %8 = vsyncpa [#allocation3], 0
    %9 = vsyncpa [#allocation6], 0
    %10 = vsyncpa [#allocation4], 0
    // Predicated region
    $region2: #{tpu_custom_call.1} parent=1 // pred_check
      _
    $region3: #{tpu_custom_call.1} parent=1 // pred_check_branch
      %12 = sbr.rel (0) target = $region5
    $region4: #{tpu_custom_call.1} parent=1 // pred_region
      %s14 = ssub.s32 2048, 2048
      %15 = vsyncadd [#allocation3], %s14
      %s16 = sshll.u32 [#allocation2], 4
      %s17 = int_to_ptr.vmem [resolvable:$true] %s16
      %22 = dma.hbm_to_vmem [thread:$0]  %s0, 2048, %s17, [#allocation3], 128, 128, 8
    $region5: #{tpu_custom_call.1} parent=1 // pred_fallthru
      _
    // Predicated region
    $region6: #{tpu_custom_call.1} parent=1 // pred_check
      _
    $region7: #{tpu_custom_call.1} parent=1 // pred_check_branch
      %24 = sbr.rel (0) target = $region9
    $region8: #{tpu_custom_call.1} parent=1 // pred_region
      %s26 = ssub.s32 2048, 2048
      %27 = vsyncadd [#allocation6], %s26
      %s28 = sshll.u32 [#allocation5], 4
      %s29 = int_to_ptr.vmem [resolvable:$true] %s28
      %34 = dma.hbm_to_vmem [thread:$0]  %s1, 2048, %s29, [#allocation6], 128, 128, 8
    $region9: #{tpu_custom_call.1} parent=1 // pred_fallthru
      _
    // Predicated region
    $region10: #{tpu_custom_call.1} parent=1 // pred_check
      _
    $region11: #{tpu_custom_call.1} parent=1 // pred_check_branch
      %36 = sbr.rel (0) target = $region13
    $region12: #{tpu_custom_call.1} parent=1 // pred_region
      _
    $region13: #{tpu_custom_call.1} parent=1 // pred_fallthru
      _
    // Predicated region
    $region14: #{tpu_custom_call.1} parent=1 // pred_check
      _
    $region15: #{tpu_custom_call.1} parent=1 // pred_check_branch
      %38 = sbr.rel (0) target = $region17
    $region16: #{tpu_custom_call.1} parent=1 // pred_region
      %39 = dma.done [#allocation3], 2048
    $region17: #{tpu_custom_call.1} parent=1 // pred_fallthru
      _
    // Predicated region
    $region18: #{tpu_custom_call.1} parent=1 // pred_check
      _
    $region19: #{tpu_custom_call.1} parent=1 // pred_check_branch
      %41 = sbr.rel (0) target = $region21
    $region20: #{tpu_custom_call.1} parent=1 // pred_region
      %42 = dma.done [#allocation6], 2048
    $region21: #{tpu_custom_call.1} parent=1 // pred_fallthru
      _
    %v43 = vld [vmem:[#allocation2] sm:$0xff]
    %v44 = vld [vmem:[#allocation2 + $0x8] sm:$0xff]
    %v45 = vld [vmem:[#allocation2 + $0x10] sm:$0xff]
    %v46 = vld [vmem:[#allocation2 + $0x18] sm:$0xff]
    %v47 = vld [vmem:[#allocation2 + $0x20] sm:$0xff]
    %v48 = vld [vmem:[#allocation2 + $0x28] sm:$0xff]
    %v49 = vld [vmem:[#allocation2 + $0x30] sm:$0xff]
    %v50 = vld [vmem:[#allocation2 + $0x38] sm:$0xff]
    %v51 = vld [vmem:[#allocation2 + $0x40] sm:$0xff]
    %v52 = vld [vmem:[#allocation2 + $0x48] sm:$0xff]
    %v53 = vld [vmem:[#allocation2 + $0x50] sm:$0xff]
    %v54 = vld [vmem:[#allocation2 + $0x58] sm:$0xff]
    %v55 = vld [vmem:[#allocation2 + $0x60] sm:$0xff]
    %v56 = vld [vmem:[#allocation2 + $0x68] sm:$0xff]
    %v57 = vld [vmem:[#allocation2 + $0x70] sm:$0xff]
    %v58 = vld [vmem:[#allocation2 + $0x78] sm:$0xff]
    %v59 = vld [vmem:[#allocation5] sm:$0xff]
    %v60 = vld [vmem:[#allocation5 + $0x8] sm:$0xff]
    %v61 = vld [vmem:[#allocation5 + $0x10] sm:$0xff]
    %v62 = vld [vmem:[#allocation5 + $0x18] sm:$0xff]
    %v63 = vld [vmem:[#allocation5 + $0x20] sm:$0xff]
    %v64 = vld [vmem:[#allocation5 + $0x28] sm:$0xff]
    %v65 = vld [vmem:[#allocation5 + $0x30] sm:$0xff]
    %v66 = vld [vmem:[#allocation5 + $0x38] sm:$0xff]
    %v67 = vld [vmem:[#allocation5 + $0x40] sm:$0xff]
    %v68 = vld [vmem:[#allocation5 + $0x48] sm:$0xff]
    %v69 = vld [vmem:[#allocation5 + $0x50] sm:$0xff]
    %v70 = vld [vmem:[#allocation5 + $0x58] sm:$0xff]
    %v71 = vld [vmem:[#allocation5 + $0x60] sm:$0xff]
    %v72 = vld [vmem:[#allocation5 + $0x68] sm:$0xff]
    %v73 = vld [vmem:[#allocation5 + $0x70] sm:$0xff]
    %v74 = vld [vmem:[#allocation5 + $0x78] sm:$0xff]
    %v75 = vld [vmem:[%s2] sm:$0x1]
    %v77 = vlaneseq
    %v78 = vshrl.u32 %v77, 7
    %v79 = vsub.s32 0, %v78
    %v80 = vrot.slane %v75, %v79
    %82 = vmatprep.subr.mxu0 0.0
    %83 = vmatpush1.msra.mxu0 %v74
    %84 = vmatprep.subr.mxu0 0.0
    %85 = vmatpush1.msra.mxu0 %v73
    %86 = vmatprep.subr.mxu0 0.0
    %87 = vmatpush1.msra.mxu0 %v72
    %88 = vmatprep.subr.mxu0 0.0
    %89 = vmatpush1.msra.mxu0 %v71
    %90 = vmatprep.subr.mxu0 0.0
    %91 = vmatpush1.msra.mxu0 %v70
    %92 = vmatprep.subr.mxu0 0.0
    %93 = vmatpush1.msra.mxu0 %v69
    %94 = vmatprep.subr.mxu0 0.0
    %95 = vmatpush1.msra.mxu0 %v68
    %96 = vmatprep.subr.mxu0 0.0
    %97 = vmatpush1.msra.mxu0 %v67
    %98 = vmatprep.subr.mxu0 0.0
    %99 = vmatpush1.msra.mxu0 %v66
    %100 = vmatprep.subr.mxu0 0.0
    %101 = vmatpush1.msra.mxu0 %v65
    %102 = vmatprep.subr.mxu0 0.0
    %103 = vmatpush1.msra.mxu0 %v64
    %104 = vmatprep.subr.mxu0 0.0
    %105 = vmatpush1.msra.mxu0 %v63
    %106 = vmatprep.subr.mxu0 0.0
    %107 = vmatpush1.msra.mxu0 %v62
    %108 = vmatprep.subr.mxu0 0.0
    %109 = vmatpush1.msra.mxu0 %v61
    %110 = vmatprep.subr.mxu0 0.0
    %111 = vmatpush1.msra.mxu0 %v60
    %112 = vmatprep.subr.mxu0 0.0
    %113 = vmatpush1.msra.mxu0 %v59
    %114 = vmatprep.subr.mxu0 0.0
    %115 = vmatpush2.msra.mxu0 0.0
    %116 = vmatprep.subr.mxu0 0.0
    %117 = vmatpush2.msra.mxu0 0.0
    %118 = vmatprep.subr.mxu0 0.0
    %119 = vmatpush2.msra.mxu0 0.0
    %120 = vmatprep.subr.mxu0 0.0
    %121 = vmatpush2.msra.mxu0 0.0
    %122 = vmatprep.subr.mxu0 0.0
    %123 = vmatpush2.msra.mxu0 0.0
    %124 = vmatprep.subr.mxu0 0.0
    %125 = vmatpush2.msra.mxu0 0.0
    %126 = vmatprep.subr.mxu0 0.0
    %127 = vmatpush2.msra.mxu0 0.0
    %128 = vmatprep.subr.mxu0 0.0
    %129 = vmatpush2.msra.mxu0 0.0
    %130 = vmatprep.subr.mxu0 0.0
    %131 = vmatpush2.msra.mxu0 0.0
    %132 = vmatprep.subr.mxu0 0.0
    %133 = vmatpush2.msra.mxu0 0.0
    %134 = vmatprep.subr.mxu0 0.0
    %135 = vmatpush2.msra.mxu0 0.0
    %136 = vmatprep.subr.mxu0 0.0
    %137 = vmatpush2.msra.mxu0 0.0
    %138 = vmatprep.subr.mxu0 0.0
    %139 = vmatpush2.msra.mxu0 0.0
    %140 = vmatprep.subr.mxu0 0.0
    %141 = vmatpush2.msra.mxu0 0.0
    %142 = vmatprep.subr.mxu0 0.0
    %143 = vmatpush2.msra.mxu0 0.0
    %144 = vmatprep.subr.mxu0 0.0
    %145 = vmatpush2.msra.mxu0 0.0
    %146 = vmatprep.mubr.f32.mxu0 0.0
    %147 = vmatmul.mubr.f32.gmra.mxu0 %v43
    %v148 = vpop.f32.mrf.mxu0
    %v149 = vadd.f32 %v80, %v148
    %v150 = vpop.f32.mrf.mxu0
    %151 = vmatprep.mubr.f32.mxu0 0.0
    %152 = vmatmul.mubr.f32.gmra.mxu0 %v44
    %v153 = vpop.f32.mrf.mxu0
    %v154 = vadd.f32 %v80, %v153
    %v155 = vpop.f32.mrf.mxu0
    %156 = vmatprep.mubr.f32.mxu0 0.0
    %157 = vmatmul.mubr.f32.gmra.mxu0 %v45
    %v158 = vpop.f32.mrf.mxu0
    %v159 = vadd.f32 %v80, %v158
    %v160 = vpop.f32.mrf.mxu0
    %161 = vmatprep.mubr.f32.mxu0 0.0
    %162 = vmatmul.mubr.f32.gmra.mxu0 %v46
    %v163 = vpop.f32.mrf.mxu0
    %v164 = vadd.f32 %v80, %v163
    %v165 = vpop.f32.mrf.mxu0
    %166 = vmatprep.mubr.f32.mxu0 0.0
    %167 = vmatmul.mubr.f32.gmra.mxu0 %v47
    %v168 = vpop.f32.mrf.mxu0
    %v169 = vadd.f32 %v80, %v168
    %v170 = vpop.f32.mrf.mxu0
    %171 = vmatprep.mubr.f32.mxu0 0.0
    %172 = vmatmul.mubr.f32.gmra.mxu0 %v48
    %v173 = vpop.f32.mrf.mxu0
    %v174 = vadd.f32 %v80, %v173
    %v175 = vpop.f32.mrf.mxu0
    %176 = vmatprep.mubr.f32.mxu0 0.0
    %177 = vmatmul.mubr.f32.gmra.mxu0 %v49
    %v178 = vpop.f32.mrf.mxu0
    %v179 = vadd.f32 %v80, %v178
    %v180 = vpop.f32.mrf.mxu0
    %181 = vmatprep.mubr.f32.mxu0 0.0
    %182 = vmatmul.mubr.f32.gmra.mxu0 %v50
    %v183 = vpop.f32.mrf.mxu0
    %v184 = vadd.f32 %v80, %v183
    %v185 = vpop.f32.mrf.mxu0
    %186 = vmatprep.mubr.f32.mxu0 0.0
    %187 = vmatmul.mubr.f32.gmra.mxu0 %v51
    %v188 = vpop.f32.mrf.mxu0
    %v189 = vadd.f32 %v80, %v188
    %v190 = vpop.f32.mrf.mxu0
    %191 = vmatprep.mubr.f32.mxu0 0.0
    %192 = vmatmul.mubr.f32.gmra.mxu0 %v52
    %v193 = vpop.f32.mrf.mxu0
    %v194 = vadd.f32 %v80, %v193
    %v195 = vpop.f32.mrf.mxu0
    %196 = vmatprep.mubr.f32.mxu0 0.0
    %197 = vmatmul.mubr.f32.gmra.mxu0 %v53
    %v198 = vpop.f32.mrf.mxu0
    %v199 = vadd.f32 %v80, %v198
    %v200 = vpop.f32.mrf.mxu0
    %201 = vmatprep.mubr.f32.mxu0 0.0
    %202 = vmatmul.mubr.f32.gmra.mxu0 %v54
    %v203 = vpop.f32.mrf.mxu0
    %v204 = vadd.f32 %v80, %v203
    %v205 = vpop.f32.mrf.mxu0
    %206 = vmatprep.mubr.f32.mxu0 0.0
    %207 = vmatmul.mubr.f32.gmra.mxu0 %v55
    %v208 = vpop.f32.mrf.mxu0
    %v209 = vadd.f32 %v80, %v208
    %v210 = vpop.f32.mrf.mxu0
    %211 = vmatprep.mubr.f32.mxu0 0.0
    %212 = vmatmul.mubr.f32.gmra.mxu0 %v56
    %v213 = vpop.f32.mrf.mxu0
    %v214 = vadd.f32 %v80, %v213
    %v215 = vpop.f32.mrf.mxu0
    %216 = vmatprep.mubr.f32.mxu0 0.0
    %217 = vmatmul.mubr.f32.gmra.mxu0 %v57
    %v218 = vpop.f32.mrf.mxu0
    %v219 = vadd.f32 %v80, %v218
    %v220 = vpop.f32.mrf.mxu0
    %221 = vmatprep.mubr.f32.mxu0 0.0
    %222 = vmatmul.mubr.f32.gmra.mxu0 %v58
    %v223 = vpop.f32.mrf.mxu0
    %v224 = vadd.f32 %v80, %v223
    %v225 = vpop.f32.mrf.mxu0
    %226 = vdwg.mxu0
    %227 = vst [vmem:[#allocation7] sm:$0xff] %v149
    %228 = vst [vmem:[#allocation7 + $0x8] sm:$0xff] %v154
    %229 = vst [vmem:[#allocation7 + $0x10] sm:$0xff] %v159
    %230 = vst [vmem:[#allocation7 + $0x18] sm:$0xff] %v164
    %231 = vst [vmem:[#allocation7 + $0x20] sm:$0xff] %v169
    %232 = vst [vmem:[#allocation7 + $0x28] sm:$0xff] %v174
    %233 = vst [vmem:[#allocation7 + $0x30] sm:$0xff] %v179
    %234 = vst [vmem:[#allocation7 + $0x38] sm:$0xff] %v184
    %235 = vst [vmem:[#allocation7 + $0x40] sm:$0xff] %v189
    %236 = vst [vmem:[#allocation7 + $0x48] sm:$0xff] %v194
    %237 = vst [vmem:[#allocation7 + $0x50] sm:$0xff] %v199
    %238 = vst [vmem:[#allocation7 + $0x58] sm:$0xff] %v204
    %239 = vst [vmem:[#allocation7 + $0x60] sm:$0xff] %v209
    %240 = vst [vmem:[#allocation7 + $0x68] sm:$0xff] %v214
    %241 = vst [vmem:[#allocation7 + $0x70] sm:$0xff] %v219
    %242 = vst [vmem:[#allocation7 + $0x78] sm:$0xff] %v224
    // Predicated region
    $region22: #{tpu_custom_call.1} parent=1 // pred_check
      _
    $region23: #{tpu_custom_call.1} parent=1 // pred_check_branch
      %244 = sbr.rel (0) target = $region25
    $region24: #{tpu_custom_call.1} parent=1 // pred_region
      %s246 = ssub.s32 2048, 2048
      %247 = vsyncadd [#allocation4], %s246
      %s248 = sshll.u32 [#allocation7], 4
      %s249 = int_to_ptr.vmem [resolvable:$true] %s248
      %254 = dma.vmem_to_hbm [thread:$0]  %s249, 2048, %s3, [#allocation4], 128, 128, 8
    $region25: #{tpu_custom_call.1} parent=1 // pred_fallthru
      _
    // Predicated region
    $region26: #{tpu_custom_call.1} parent=1 // pred_check
      _
    $region27: #{tpu_custom_call.1} parent=1 // pred_check_branch
      %256 = sbr.rel (0) target = $region29
    $region28: #{tpu_custom_call.1} parent=1 // pred_region
      %257 = dma.done [#allocation4], 2048
    $region29: #{tpu_custom_call.1} parent=1 // pred_fallthru
      _
    %258 = vsyncpa [#allocation3], 1
    %259 = vsyncpa [#allocation6], 1
    %260 = vsyncpa [#allocation4], 1

// kernel: tpu_custom_call.1
$region0: #{tpu_custom_call.1}
  #allocation0 [shape = 'u32[]', space=smem, size = 0x4, offset = 0x4, fixed_abs, tag = 'smem constant byte address 0x4 - core index']
  #allocation1 [shape = 'u32[144,128]{1,0:T(1,128)}', space=vmem, size = 0x12000, scoped, tag = 'internal scratch']
  %s0 = inlined_call_operand.hbm [shape: f32[128,128], index: 0, kind: input, shape index: {}]
  %s1 = inlined_call_operand.hbm [shape: f32[128,128], index: 1, kind: input, shape index: {}]
  %s2 = inlined_call_operand.vmem [shape: f32[1,128], index: 2, kind: input, shape index: {}]
  %s3 = inlined_call_operand.hbm [shape: f32[128,128], index: 3, kind: output, shape index: {}]
  %s4 = sld [smem:[#allocation0]]
  $region30: #{tpu_custom_call.1} parent=0
    _
  %s6 = ssub.s32 1, %s4
  %s7 = scalar_select 0, %s6, %s4
  $region1: #{tpu_custom_call.1} parent=0
    #allocation2 [shape = 'u8[65536]{0}', space=vmem, size = 0x10000, scoped, tag = 'input window, operand 0, single buffered']
    #allocation3 [shape = 's32[1]{0}', space=sflag, size = 0x4, scoped, tag = 'scoped memory for tpu_custom_call.1']
    #allocation4 [shape = 's32[1]{0}', space=sflag, size = 0x4, scoped, tag = 'scoped memory for tpu_custom_call.1']
    #allocation5 [shape = 'u8[65536]{0}', space=vmem, size = 0x10000, scoped, tag = 'input window, operand 1, single buffered']
    #allocation6 [shape = 's32[1]{0}', space=sflag, size = 0x4, scoped, tag = 'scoped memory for tpu_custom_call.1']
    #allocation7 [shape = 'u8[65536]{0}', space=vmem, size = 0x10000, scoped, tag = 'output window, operand 0, single buffered']
    %8 = vsyncpa [#allocation3], 0
    %9 = vsyncpa [#allocation6], 0
    %10 = vsyncpa [#allocation4], 0
    // Predicated region
    $region2: #{tpu_custom_call.1} parent=1 // pred_check
      _
    $region3: #{tpu_custom_call.1} parent=1 // pred_check_branch
      %12 = sbr.rel (0) target = $region5
    $region4: #{tpu_custom_call.1} parent=1 // pred_region
      %s14 = ssub.s32 2048, 2048
      %15 = vsyncadd [#allocation3], %s14
      %s16 = sshll.u32 [#allocation2], 4
      %s17 = int_to_ptr.vmem [resolvable:$true] %s16
      %22 = dma.hbm_to_vmem [thread:$0]  %s0, 2048, %s17, [#allocation3], 128, 128, 8
    $region5: #{tpu_custom_call.1} parent=1 // pred_fallthru
      _
    // Predicated region
    $region6: #{tpu_custom_call.1} parent=1 // pred_check
      _
    $region7: #{tpu_custom_call.1} parent=1 // pred_check_branch
      %24 = sbr.rel (0) target = $region9
    $region8: #{tpu_custom_call.1} parent=1 // pred_region
      %s26 = ssub.s32 2048, 2048
      %27 = vsyncadd [#allocation6], %s26
      %s28 = sshll.u32 [#allocation5], 4
      %s29 = int_to_ptr.vmem [resolvable:$true] %s28
      %34 = dma.hbm_to_vmem [thread:$0]  %s1, 2048, %s29, [#allocation6], 128, 128, 8
    $region9: #{tpu_custom_call.1} parent=1 // pred_fallthru
      _
    // Predicated region
    $region10: #{tpu_custom_call.1} parent=1 // pred_check
      _
    $region11: #{tpu_custom_call.1} parent=1 // pred_check_branch
      %36 = sbr.rel (0) target = $region13
    $region12: #{tpu_custom_call.1} parent=1 // pred_region
      _
    $region13: #{tpu_custom_call.1} parent=1 // pred_fallthru
      _
    // Predicated region
    $region14: #{tpu_custom_call.1} parent=1 // pred_check
      _
    $region15: #{tpu_custom_call.1} parent=1 // pred_check_branch
      %38 = sbr.rel (0) target = $region17
    $region16: #{tpu_custom_call.1} parent=1 // pred_region
      %39 = dma.done [#allocation3], 2048
    $region17: #{tpu_custom_call.1} parent=1 // pred_fallthru
      _
    // Predicated region
    $region18: #{tpu_custom_call.1} parent=1 // pred_check
      _
    $region19: #{tpu_custom_call.1} parent=1 // pred_check_branch
      %41 = sbr.rel (0) target = $region21
    $region20: #{tpu_custom_call.1} parent=1 // pred_region
      %42 = dma.done [#allocation6], 2048
    $region21: #{tpu_custom_call.1} parent=1 // pred_fallthru
      _
    %v43 = vld [vmem:[#allocation2] sm:$0xff]
    %v44 = vld [vmem:[#allocation2 + $0x8] sm:$0xff]
    %v45 = vld [vmem:[#allocation2 + $0x10] sm:$0xff]
    %v46 = vld [vmem:[#allocation2 + $0x18] sm:$0xff]
    %v47 = vld [vmem:[#allocation2 + $0x20] sm:$0xff]
    %v48 = vld [vmem:[#allocation2 + $0x28] sm:$0xff]
    %v49 = vld [vmem:[#allocation2 + $0x30] sm:$0xff]
    %v50 = vld [vmem:[#allocation2 + $0x38] sm:$0xff]
    %v51 = vld [vmem:[#allocation2 + $0x40] sm:$0xff]
    %v52 = vld [vmem:[#allocation2 + $0x48] sm:$0xff]
    %v53 = vld [vmem:[#allocation2 + $0x50] sm:$0xff]
    %v54 = vld [vmem:[#allocation2 + $0x58] sm:$0xff]
    %v55 = vld [vmem:[#allocation2 + $0x60] sm:$0xff]
    %v56 = vld [vmem:[#allocation2 + $0x68] sm:$0xff]
    %v57 = vld [vmem:[#allocation2 + $0x70] sm:$0xff]
    %v58 = vld [vmem:[#allocation2 + $0x78] sm:$0xff]
    %v59 = vld [vmem:[#allocation5] sm:$0xff]
    %v60 = vld [vmem:[#allocation5 + $0x8] sm:$0xff]
    %v61 = vld [vmem:[#allocation5 + $0x10] sm:$0xff]
    %v62 = vld [vmem:[#allocation5 + $0x18] sm:$0xff]
    %v63 = vld [vmem:[#allocation5 + $0x20] sm:$0xff]
    %v64 = vld [vmem:[#allocation5 + $0x28] sm:$0xff]
    %v65 = vld [vmem:[#allocation5 + $0x30] sm:$0xff]
    %v66 = vld [vmem:[#allocation5 + $0x38] sm:$0xff]
    %v67 = vld [vmem:[#allocation5 + $0x40] sm:$0xff]
    %v68 = vld [vmem:[#allocation5 + $0x48] sm:$0xff]
    %v69 = vld [vmem:[#allocation5 + $0x50] sm:$0xff]
    %v70 = vld [vmem:[#allocation5 + $0x58] sm:$0xff]
    %v71 = vld [vmem:[#allocation5 + $0x60] sm:$0xff]
    %v72 = vld [vmem:[#allocation5 + $0x68] sm:$0xff]
    %v73 = vld [vmem:[#allocation5 + $0x70] sm:$0xff]
    %v74 = vld [vmem:[#allocation5 + $0x78] sm:$0xff]
    %v75 = vld [vmem:[%s2] sm:$0x1]
    %v77 = vlaneseq
    %v78 = vshrl.u32 %v77, 7
    %v79 = vsub.s32 0, %v78
    %v80 = vrot.slane %v75, %v79
    %82 = vmatprep.subr.mxu0 0.0
    %83 = vmatpush1.msra.mxu0 %v74
    %84 = vmatprep.subr.mxu0 0.0
    %85 = vmatpush1.msra.mxu0 %v73
    %86 = vmatprep.subr.mxu0 0.0
    %87 = vmatpush1.msra.mxu0 %v72
    %88 = vmatprep.subr.mxu0 0.0
    %89 = vmatpush1.msra.mxu0 %v71
    %90 = vmatprep.subr.mxu0 0.0
    %91 = vmatpush1.msra.mxu0 %v70
    %92 = vmatprep.subr.mxu0 0.0
    %93 = vmatpush1.msra.mxu0 %v69
    %94 = vmatprep.subr.mxu0 0.0
    %95 = vmatpush1.msra.mxu0 %v68
    %96 = vmatprep.subr.mxu0 0.0
    %97 = vmatpush1.msra.mxu0 %v67
    %98 = vmatprep.subr.mxu0 0.0
    %99 = vmatpush1.msra.mxu0 %v66
    %100 = vmatprep.subr.mxu0 0.0
    %101 = vmatpush1.msra.mxu0 %v65
    %102 = vmatprep.subr.mxu0 0.0
    %103 = vmatpush1.msra.mxu0 %v64
    %104 = vmatprep.subr.mxu0 0.0
    %105 = vmatpush1.msra.mxu0 %v63
    %106 = vmatprep.subr.mxu0 0.0
    %107 = vmatpush1.msra.mxu0 %v62
    %108 = vmatprep.subr.mxu0 0.0
    %109 = vmatpush1.msra.mxu0 %v61
    %110 = vmatprep.subr.mxu0 0.0
    %111 = vmatpush1.msra.mxu0 %v60
    %112 = vmatprep.subr.mxu0 0.0
    %113 = vmatpush1.msra.mxu0 %v59
    %114 = vmatprep.subr.mxu0 0.0
    %115 = vmatpush2.msra.mxu0 0.0
    %116 = vmatprep.subr.mxu0 0.0
    %117 = vmatpush2.msra.mxu0 0.0
    %118 = vmatprep.subr.mxu0 0.0
    %119 = vmatpush2.msra.mxu0 0.0
    %120 = vmatprep.subr.mxu0 0.0
    %121 = vmatpush2.msra.mxu0 0.0
    %122 = vmatprep.subr.mxu0 0.0
    %123 = vmatpush2.msra.mxu0 0.0
    %124 = vmatprep.subr.mxu0 0.0
    %125 = vmatpush2.msra.mxu0 0.0
    %126 = vmatprep.subr.mxu0 0.0
    %127 = vmatpush2.msra.mxu0 0.0
    %128 = vmatprep.subr.mxu0 0.0
    %129 = vmatpush2.msra.mxu0 0.0
    %130 = vmatprep.subr.mxu0 0.0
    %131 = vmatpush2.msra.mxu0 0.0
    %132 = vmatprep.subr.mxu0 0.0
    %133 = vmatpush2.msra.mxu0 0.0
    %134 = vmatprep.subr.mxu0 0.0
    %135 = vmatpush2.msra.mxu0 0.0
    %136 = vmatprep.subr.mxu0 0.0
    %137 = vmatpush2.msra.mxu0 0.0
    %138 = vmatprep.subr.mxu0 0.0
    %139 = vmatpush2.msra.mxu0 0.0
    %140 = vmatprep.subr.mxu0 0.0
    %141 = vmatpush2.msra.mxu0 0.0
    %142 = vmatprep.subr.mxu0 0.0
    %143 = vmatpush2.msra.mxu0 0.0
    %144 = vmatprep.subr.mxu0 0.0
    %145 = vmatpush2.msra.mxu0 0.0
    %146 = vmatprep.mubr.f32.mxu0 0.0
    %147 = vmatmul.mubr.f32.gmra.mxu0 %v43
    %v148 = vpop.f32.mrf.mxu0
    %v149 = vadd.f32 %v80, %v148
    %v150 = vpop.f32.mrf.mxu0
    %151 = vmatprep.mubr.f32.mxu0 0.0
    %152 = vmatmul.mubr.f32.gmra.mxu0 %v44
    %v153 = vpop.f32.mrf.mxu0
    %v154 = vadd.f32 %v80, %v153
    %v155 = vpop.f32.mrf.mxu0
    %156 = vmatprep.mubr.f32.mxu0 0.0
    %157 = vmatmul.mubr.f32.gmra.mxu0 %v45
    %v158 = vpop.f32.mrf.mxu0
    %v159 = vadd.f32 %v80, %v158
    %v160 = vpop.f32.mrf.mxu0
    %161 = vmatprep.mubr.f32.mxu0 0.0
    %162 = vmatmul.mubr.f32.gmra.mxu0 %v46
    %v163 = vpop.f32.mrf.mxu0
    %v164 = vadd.f32 %v80, %v163
    %v165 = vpop.f32.mrf.mxu0
    %166 = vmatprep.mubr.f32.mxu0 0.0
    %167 = vmatmul.mubr.f32.gmra.mxu0 %v47
    %v168 = vpop.f32.mrf.mxu0
    %v169 = vadd.f32 %v80, %v168
    %v170 = vpop.f32.mrf.mxu0
    %171 = vmatprep.mubr.f32.mxu0 0.0
    %172 = vmatmul.mubr.f32.gmra.mxu0 %v48
    %v173 = vpop.f32.mrf.mxu0
    %v174 = vadd.f32 %v80, %v173
    %v175 = vpop.f32.mrf.mxu0
    %176 = vmatprep.mubr.f32.mxu0 0.0
    %177 = vmatmul.mubr.f32.gmra.mxu0 %v49
    %v178 = vpop.f32.mrf.mxu0
    %v179 = vadd.f32 %v80, %v178
    %v180 = vpop.f32.mrf.mxu0
    %181 = vmatprep.mubr.f32.mxu0 0.0
    %182 = vmatmul.mubr.f32.gmra.mxu0 %v50
    %v183 = vpop.f32.mrf.mxu0
    %v184 = vadd.f32 %v80, %v183
    %v185 = vpop.f32.mrf.mxu0
    %186 = vmatprep.mubr.f32.mxu0 0.0
    %187 = vmatmul.mubr.f32.gmra.mxu0 %v51
    %v188 = vpop.f32.mrf.mxu0
    %v189 = vadd.f32 %v80, %v188
    %v190 = vpop.f32.mrf.mxu0
    %191 = vmatprep.mubr.f32.mxu0 0.0
    %192 = vmatmul.mubr.f32.gmra.mxu0 %v52
    %v193 = vpop.f32.mrf.mxu0
    %v194 = vadd.f32 %v80, %v193
    %v195 = vpop.f32.mrf.mxu0
    %196 = vmatprep.mubr.f32.mxu0 0.0
    %197 = vmatmul.mubr.f32.gmra.mxu0 %v53
    %v198 = vpop.f32.mrf.mxu0
    %v199 = vadd.f32 %v80, %v198
    %v200 = vpop.f32.mrf.mxu0
    %201 = vmatprep.mubr.f32.mxu0 0.0
    %202 = vmatmul.mubr.f32.gmra.mxu0 %v54
    %v203 = vpop.f32.mrf.mxu0
    %v204 = vadd.f32 %v80, %v203
    %v205 = vpop.f32.mrf.mxu0
    %206 = vmatprep.mubr.f32.mxu0 0.0
    %207 = vmatmul.mubr.f32.gmra.mxu0 %v55
    %v208 = vpop.f32.mrf.mxu0
    %v209 = vadd.f32 %v80, %v208
    %v210 = vpop.f32.mrf.mxu0
    %211 = vmatprep.mubr.f32.mxu0 0.0
    %212 = vmatmul.mubr.f32.gmra.mxu0 %v56
    %v213 = vpop.f32.mrf.mxu0
    %v214 = vadd.f32 %v80, %v213
    %v215 = vpop.f32.mrf.mxu0
    %216 = vmatprep.mubr.f32.mxu0 0.0
    %217 = vmatmul.mubr.f32.gmra.mxu0 %v57
    %v218 = vpop.f32.mrf.mxu0
    %v219 = vadd.f32 %v80, %v218
    %v220 = vpop.f32.mrf.mxu0
    %221 = vmatprep.mubr.f32.mxu0 0.0
    %222 = vmatmul.mubr.f32.gmra.mxu0 %v58
    %v223 = vpop.f32.mrf.mxu0
    %v224 = vadd.f32 %v80, %v223
    %v225 = vpop.f32.mrf.mxu0
    %226 = vdwg.mxu0
    %227 = vst [vmem:[#allocation7] sm:$0xff] %v149
    %228 = vst [vmem:[#allocation7 + $0x8] sm:$0xff] %v154
    %229 = vst [vmem:[#allocation7 + $0x10] sm:$0xff] %v159
    %230 = vst [vmem:[#allocation7 + $0x18] sm:$0xff] %v164
    %231 = vst [vmem:[#allocation7 + $0x20] sm:$0xff] %v169
    %232 = vst [vmem:[#allocation7 + $0x28] sm:$0xff] %v174
    %233 = vst [vmem:[#allocation7 + $0x30] sm:$0xff] %v179
    %234 = vst [vmem:[#allocation7 + $0x38] sm:$0xff] %v184
    %235 = vst [vmem:[#allocation7 + $0x40] sm:$0xff] %v189
    %236 = vst [vmem:[#allocation7 + $0x48] sm:$0xff] %v194
    %237 = vst [vmem:[#allocation7 + $0x50] sm:$0xff] %v199
    %238 = vst [vmem:[#allocation7 + $0x58] sm:$0xff] %v204
    %239 = vst [vmem:[#allocation7 + $0x60] sm:$0xff] %v209
    %240 = vst [vmem:[#allocation7 + $0x68] sm:$0xff] %v214
    %241 = vst [vmem:[#allocation7 + $0x70] sm:$0xff] %v219
    %242 = vst [vmem:[#allocation7 + $0x78] sm:$0xff] %v224
    // Predicated region
    $region22: #{tpu_custom_call.1} parent=1 // pred_check
      _
    $region23: #{tpu_custom_call.1} parent=1 // pred_check_branch
      %244 = sbr.rel (0) target = $region25
    $region24: #{tpu_custom_call.1} parent=1 // pred_region
      %s246 = ssub.s32 2048, 2048
      %247 = vsyncadd [#allocation4], %s246
      %s248 = sshll.u32 [#allocation7], 4
      %s249 = int_to_ptr.vmem [resolvable:$true] %s248
      %254 = dma.vmem_to_hbm [thread:$0]  %s249, 2048, %s3, [#allocation4], 128, 128, 8
    $region25: #{tpu_custom_call.1} parent=1 // pred_fallthru
      _
    // Predicated region
    $region26: #{tpu_custom_call.1} parent=1 // pred_check
      _
    $region27: #{tpu_custom_call.1} parent=1 // pred_check_branch
      %256 = sbr.rel (0) target = $region29
    $region28: #{tpu_custom_call.1} parent=1 // pred_region
      %257 = dma.done [#allocation4], 2048
    $region29: #{tpu_custom_call.1} parent=1 // pred_fallthru
      _
    %258 = vsyncpa [#allocation3], 1
    %259 = vsyncpa [#allocation6], 1
    %260 = vsyncpa [#allocation4], 1

</llo_original>
